<compile_context>
chip_gen: v7x
topology: tpu7x:2x2x1
jax: 0.10.0
libtpu: 0.0.40
codegen_flags: <defaults>
</compile_context>

<pallas_src>
import jax
import jax.numpy as jnp
from jax.experimental import pallas as pl
from jax.experimental.pallas import tpu as pltpu

SIGMA = 9.0
_MAX_TILE_ROWS = 2048   # 2048 rows x 128 lanes x 5 ch x 4 B ~= 5.2 MiB / buffer


def _cdiv(a, b):
    return -(-a // b)


def _round_up(a, b):
    return _cdiv(a, b) * b


def _rpn_regr_partial_kernel(data_ref, out_ref):
    """data_ref: (5, tile_rows, 128) f32 = [cls, true0, true1, pred0, pred1].
    out_ref : (1, 2, 8, 128) f32 = per-lane partial [loss_sum, pos_count]."""
    cls = data_ref[0]                                   # (tile_rows, 128)
    pos = cls == 1.0                                    # one compare, reused

    inv_sigma = 1.0 / SIGMA

    def smooth_l1(t, p):
        diff = jnp.abs(t - p)
        return jnp.where(diff < inv_sigma,
                         (0.5 * SIGMA) * diff * diff,
                         diff - 0.5 * inv_sigma)

    # Per-anchor loss (sum over the two regression channels), zeroed for
    # non-positive / padded anchors with a single select (no mask multiply).
    loss = jnp.where(pos,
                     smooth_l1(data_ref[1], data_ref[3])
                     + smooth_l1(data_ref[2], data_ref[4]),
                     0.0)
    cnt = jnp.where(pos, 1.0, 0.0)

    tr = loss.shape[0]
    # Fold the row axis down to one (8,128) vreg tile with cheap VPU adds; the
    # expensive cross-lane reduction happens once in the wrapper over a few KB.
    out_ref[0, 0] = loss.reshape(tr // 8, 8, 128).sum(axis=0)
    out_ref[0, 1] = cnt.reshape(tr // 8, 8, 128).sum(axis=0)


@jax.jit
def rpn_regr_loss(y_pred, y_true):
    """y_pred: [B, N, 2] float32, y_true: [B, N, 3] float32 -> scalar f32."""
    n = y_true.shape[1]

    # --- grid sizing --------------------------------------------------------
    rows = _cdiv(n, 128)                    # anchors packed 128 per lane-row
    num_blocks = max(1, _cdiv(rows, _MAX_TILE_ROWS))
    if rows > 16:
        # >= 2 blocks, even count, so both v7x TensorCores get equal work.
        num_blocks = _round_up(max(num_blocks, 2), 2)
    tile_rows = _round_up(_cdiv(rows, num_blocks), 8)
    rows_pad = num_blocks * tile_rows
    n_pad = rows_pad * 128

    # --- channel-major packed slab (5, rows_pad, 128) -----------------------
    # [cls, true0, true1, pred0, pred1]. Padding cls with 0 keeps padded
    # anchors out of both the loss sum and the positive count.  With
    # allow_input_fusion the repack is fused into the pallas_call input
    # pipeline instead of materializing a second copy of the slab in HBM.
    cls = y_true[0, :, 0][None, :]                       # [1, N]
    regr_true = jnp.transpose(y_true[0, :, 1:3])         # [2, N]
    regr_pred = jnp.transpose(y_pred[0])                 # [2, N]
    packed = jnp.concatenate([cls, regr_true, regr_pred], axis=0)   # [5, N]
    packed = jnp.pad(packed, ((0, 0), (0, n_pad - n)))
    packed = packed.reshape(5, rows_pad, 128)

    in_spec_kwargs = {}
    if num_blocks >= 3:
        # Deeper input buffering keeps the HBM pipe full on v7x for large N.
        in_spec_kwargs["pipeline_mode"] = pl.Buffered(3)
    in_spec = pl.BlockSpec((5, tile_rows, 128), lambda i: (0, i, 0),
                           **in_spec_kwargs)

    partials = pl.pallas_call(
        _rpn_regr_partial_kernel,
        out_shape=jax.ShapeDtypeStruct((num_blocks, 2, 8, 128), jnp.float32),
        grid_spec=pltpu.PrefetchScalarGridSpec(
            num_scalar_prefetch=0,
            grid=(num_blocks,),
            in_specs=[in_spec],
            out_specs=pl.BlockSpec((1, 2, 8, 128), lambda i: (i, 0, 0, 0)),
        ),
        compiler_params=pltpu.CompilerParams(
            dimension_semantics=("parallel",),
            allow_input_fusion=[True],
            vmem_limit_bytes=32 * 1024 * 1024,   # safe on v5e's 16 MiB default
        ),
    )(packed)

    loss_sum = jnp.sum(partials[:, 0])
    cnt = jnp.sum(partials[:, 1])
    return jnp.where(cnt > 0.0, loss_sum / cnt, 0.0)


def _reference(y_pred, y_true):
    cls = y_true[0, :, 0]
    mask = (cls == 1.0).astype(jnp.float32)[:, None]
    diff = jnp.abs(y_true[0, :, 1:3] - y_pred[0])
    less_one = (diff < 1.0 / SIGMA).astype(jnp.float32)
    loss = less_one * 0.5 * diff ** 2 * SIGMA + (1.0 - less_one) * (diff - 0.5 / SIGMA)
    num = jnp.sum(loss * mask)
    den = jnp.sum(mask)
    return jnp.where(den > 0, num / den, 0.0)


if __name__ == "__main__":
    key = jax.random.PRNGKey(0)
    k1, k2, k3 = jax.random.split(key, 3)

    B, N = 2, 256
    y_pred = jax.random.normal(k1, (B, N, 2), dtype=jnp.float32)
    regr = jax.random.normal(k2, (B, N, 2), dtype=jnp.float32)
    # cls labels in {-1, 0, 1}; only cls == 1 anchors contribute
    cls = jax.random.randint(k3, (B, N, 1), -1, 2).astype(jnp.float32)
    y_true = jnp.concatenate([cls, regr], axis=-1)       # [B, N, 3]

    loss = rpn_regr_loss(y_pred, y_true)
    jax.block_until_ready(loss)

    ref = _reference(y_pred, y_true)
    assert jnp.allclose(loss, ref, atol=1e-5, rtol=1e-5), (loss, ref)
    print("KERNEL_OK")
</pallas_src>

<mosaic_0001>
module attributes {stable_mosaic.version = 11 : i64} {
  func.func @_rpn_regr_partial_kernel(%arg0: i32, %arg1: memref<5x8x128xf32, #tpu.memory_space<vmem>>, %arg2: memref<1x2x8x128xf32, #tpu.memory_space<vmem>>) attributes {dimension_semantics = [#tpu.dimension_semantics<parallel>], iteration_bounds = array<i64: 1>, scalar_prefetch = 0 : i64, scratch_operands = 0 : i64, tpu.core_type = #tpu.core_type<tc>, window_params = [{transform_indices = @transform_0, window_bounds = array<i64: 5, 8, 128>}, {transform_indices = @transform_1, window_bounds = array<i64: 1, 2, 8, 128>}]} {
    %c0 = arith.constant 0 : index
    %c0_0 = arith.constant 0 : index
    %c0_1 = arith.constant 0 : index
    %0 = vector.load %arg1[%c0, %c0_0, %c0_1] : memref<5x8x128xf32, #tpu.memory_space<vmem>>, vector<1x8x128xf32>
    %1 = vector.shape_cast %0 : vector<1x8x128xf32> to vector<8x128xf32>
    %cst = arith.constant 1.000000e+00 : f32
    %2 = vector.broadcast %cst : f32 to vector<8x128xf32>
    %3 = arith.cmpf oeq, %1, %2 : vector<8x128xf32>
    %c1 = arith.constant 1 : index
    %c0_2 = arith.constant 0 : index
    %c0_3 = arith.constant 0 : index
    %4 = vector.load %arg1[%c1, %c0_2, %c0_3] : memref<5x8x128xf32, #tpu.memory_space<vmem>>, vector<1x8x128xf32>
    %5 = vector.shape_cast %4 : vector<1x8x128xf32> to vector<8x128xf32>
    %c3 = arith.constant 3 : index
    %c0_4 = arith.constant 0 : index
    %c0_5 = arith.constant 0 : index
    %6 = vector.load %arg1[%c3, %c0_4, %c0_5] : memref<5x8x128xf32, #tpu.memory_space<vmem>>, vector<1x8x128xf32>
    %7 = vector.shape_cast %6 : vector<1x8x128xf32> to vector<8x128xf32>
    %8 = arith.subf %5, %7 : vector<8x128xf32>
    %9 = math.absf %8 : vector<8x128xf32>
    %cst_6 = arith.constant 0.111111112 : f32
    %10 = vector.broadcast %cst_6 : f32 to vector<8x128xf32>
    %11 = arith.cmpf olt, %9, %10 : vector<8x128xf32>
    %cst_7 = arith.constant 4.500000e+00 : f32
    %12 = vector.broadcast %cst_7 : f32 to vector<8x128xf32>
    %13 = arith.mulf %12, %9 : vector<8x128xf32>
    %14 = arith.mulf %13, %9 : vector<8x128xf32>
    %cst_8 = arith.constant 0.055555556 : f32
    %15 = vector.broadcast %cst_8 : f32 to vector<8x128xf32>
    %16 = arith.subf %9, %15 : vector<8x128xf32>
    %17 = arith.select %11, %14, %16 : vector<8x128xi1>, vector<8x128xf32>
    %c2 = arith.constant 2 : index
    %c0_9 = arith.constant 0 : index
    %c0_10 = arith.constant 0 : index
    %18 = vector.load %arg1[%c2, %c0_9, %c0_10] : memref<5x8x128xf32, #tpu.memory_space<vmem>>, vector<1x8x128xf32>
    %19 = vector.shape_cast %18 : vector<1x8x128xf32> to vector<8x128xf32>
    %c4 = arith.constant 4 : index
    %c0_11 = arith.constant 0 : index
    %c0_12 = arith.constant 0 : index
    %20 = vector.load %arg1[%c4, %c0_11, %c0_12] : memref<5x8x128xf32, #tpu.memory_space<vmem>>, vector<1x8x128xf32>
    %21 = vector.shape_cast %20 : vector<1x8x128xf32> to vector<8x128xf32>
    %22 = arith.subf %19, %21 : vector<8x128xf32>
    %23 = math.absf %22 : vector<8x128xf32>
    %cst_13 = arith.constant 0.111111112 : f32
    %24 = vector.broadcast %cst_13 : f32 to vector<8x128xf32>
    %25 = arith.cmpf olt, %23, %24 : vector<8x128xf32>
    %cst_14 = arith.constant 4.500000e+00 : f32
    %26 = vector.broadcast %cst_14 : f32 to vector<8x128xf32>
    %27 = arith.mulf %26, %23 : vector<8x128xf32>
    %28 = arith.mulf %27, %23 : vector<8x128xf32>
    %cst_15 = arith.constant 0.055555556 : f32
    %29 = vector.broadcast %cst_15 : f32 to vector<8x128xf32>
    %30 = arith.subf %23, %29 : vector<8x128xf32>
    %31 = arith.select %25, %28, %30 : vector<8x128xi1>, vector<8x128xf32>
    %32 = arith.addf %17, %31 : vector<8x128xf32>
    %cst_16 = arith.constant 0.000000e+00 : f32
    %33 = vector.broadcast %cst_16 : f32 to vector<8x128xf32>
    %34 = arith.select %3, %32, %33 : vector<8x128xi1>, vector<8x128xf32>
    %cst_17 = arith.constant 1.000000e+00 : f32
    %cst_18 = arith.constant 0.000000e+00 : f32
    %35 = vector.broadcast %cst_17 : f32 to vector<8x128xf32>
    %36 = vector.broadcast %cst_18 : f32 to vector<8x128xf32>
    %37 = arith.select %3, %35, %36 : vector<8x128xi1>, vector<8x128xf32>
    %38 = vector.shape_cast %34 : vector<8x128xf32> to vector<1x8x128xf32>
    %cst_19 = arith.constant dense<0.000000e+00> : vector<8x128xf32>
    %39 = vector.multi_reduction <add>, %38, %cst_19 [0] : vector<1x8x128xf32> to vector<8x128xf32>
    %c0_20 = arith.constant 0 : index
    %c0_21 = arith.constant 0 : index
    %c0_22 = arith.constant 0 : index
    %c0_23 = arith.constant 0 : index
    %40 = vector.load %arg2[%c0_20, %c0_21, %c0_22, %c0_23] : memref<1x2x8x128xf32, #tpu.memory_space<vmem>>, vector<1x1x8x128xf32>
    %41 = vector.shape_cast %40 : vector<1x1x8x128xf32> to vector<8x128xf32>
    %42 = vector.shape_cast %39 : vector<8x128xf32> to vector<1x1x8x128xf32>
    tpu.vector_store %arg2[%c0_20, %c0_21, %c0_22, %c0_23], %42 {strides = array<i32>} : memref<1x2x8x128xf32, #tpu.memory_space<vmem>>, vector<1x1x8x128xf32>,
    %43 = vector.shape_cast %37 : vector<8x128xf32> to vector<1x8x128xf32>
    %cst_24 = arith.constant dense<0.000000e+00> : vector<8x128xf32>
    %44 = vector.multi_reduction <add>, %43, %cst_24 [0] : vector<1x8x128xf32> to vector<8x128xf32>
    %c0_25 = arith.constant 0 : index
    %c1_26 = arith.constant 1 : index
    %c0_27 = arith.constant 0 : index
    %c0_28 = arith.constant 0 : index
    %45 = vector.load %arg2[%c0_25, %c1_26, %c0_27, %c0_28] : memref<1x2x8x128xf32, #tpu.memory_space<vmem>>, vector<1x1x8x128xf32>
    %46 = vector.shape_cast %45 : vector<1x1x8x128xf32> to vector<8x128xf32>
    %47 = vector.shape_cast %44 : vector<8x128xf32> to vector<1x1x8x128xf32>
    tpu.vector_store %arg2[%c0_25, %c1_26, %c0_27, %c0_28], %47 {strides = array<i32>} : memref<1x2x8x128xf32, #tpu.memory_space<vmem>>, vector<1x1x8x128xf32>,
    return
  }
  func.func @transform_0(%arg0: i32) -> (i32, i32, i32) {
    %c0_i32 = arith.constant 0 : i32
    %c0_i32_0 = arith.constant 0 : i32
    %c0_i32_1 = arith.constant 0 : i32
    return %c0_i32, %arg0, %c0_i32_0 : i32, i32, i32
  }
  func.func @transform_1(%arg0: i32) -> (i32, i32, i32, i32) {
    %c0_i32 = arith.constant 0 : i32
    %c0_i32_0 = arith.constant 0 : i32
    %c0_i32_1 = arith.constant 0 : i32
    %c0_i32_2 = arith.constant 0 : i32
    return %arg0, %c0_i32, %c0_i32_0, %c0_i32_1 : i32, i32, i32, i32
  }
}

</mosaic_0001>

<llo_original>
// kernel: rpn_regr_loss.2
$region0: #{rpn_regr_loss.2}
  #allocation0 [shape = 'u32[]', space=smem, size = 0x4, offset = 0x4, fixed_abs, tag = 'smem constant byte address 0x4 - core index']
  #allocation1 [shape = 'u32[144,128]{1,0:T(1,128)}', space=vmem, size = 0x12000, scoped, tag = 'internal scratch']
  %s0 = inlined_call_operand.vmem [shape: f32[1,5,8,128], index: 0, kind: input, shape index: {}]
  %s1 = inlined_call_operand.vmem [shape: f32[1,2,8,128], index: 1, kind: output, shape index: {}]
  %s2 = sld [smem:[#allocation0]]
  $region14: #{rpn_regr_loss.2} parent=0
    _
  %s4 = ssub.s32 1, %s2
  %s5 = scalar_select 0, %s4, %s2
  $region1: #{rpn_regr_loss.2} parent=0
    #allocation2 [shape = 'u8[20480]{0}', space=vmem, size = 0x5000, dematerialized = true, scoped, tag = 'FusionAdapter Buffer %fusion.2 = f32[5,8,128]{2,1,0:T(8,128)} fusion(%param_0.12), kind=kLoop, calls=%fused_computation.5.clone, metadata={op_name="jit(rpn_regr_loss)/reshape" stack_frame_id=16}']
    // Predicated region
    $region2: #{rpn_regr_loss.2} parent=1 // pred_check
      _
    $region3: #{rpn_regr_loss.2} parent=1 // pred_check_branch
      %7 = sbr.rel (0) target = $region5
    $region4: #{rpn_regr_loss.2} parent=1 // pred_region
      _
    $region5: #{rpn_regr_loss.2} parent=1 // pred_fallthru
      _
    %v8 = vld [vmem:[%s0] sm:$0xff]
    %10 = vst [vmem:[#allocation2] sm:$0xff] %v8
    %s11 = scalar_lea.vmem %s0, 8
    %v12 = vld [vmem:[%s11] sm:$0xff]
    %s13 = scalar_lea.vmem [#allocation2], 8
    %15 = vst [vmem:[%s13] sm:$0xff] %v12
    %s16 = scalar_lea.vmem %s0, 16
    %v17 = vld [vmem:[%s16] sm:$0xff]
    %s18 = scalar_lea.vmem [#allocation2], 16
    %20 = vst [vmem:[%s18] sm:$0xff] %v17
    %s21 = scalar_lea.vmem %s0, 24
    %v22 = vld [vmem:[%s21] sm:$0xff]
    %s23 = scalar_lea.vmem [#allocation2], 24
    %25 = vst [vmem:[%s23] sm:$0xff] %v22
    %s26 = scalar_lea.vmem %s0, 32
    %v27 = vld [vmem:[%s26] sm:$0xff]
    %s28 = scalar_lea.vmem [#allocation2], 32
    %30 = vst [vmem:[%s28] sm:$0xff] %v27
    %v31 = vld [vmem:[#allocation2] sm:$0xff]
    %vm32 = vcmp.eq.f32.partialorder %v31, 1.0
    %s33 = scalar_lea.vmem [#allocation2], 8
    %v34 = vld [vmem:[%s33] sm:$0xff]
    %s35 = scalar_lea.vmem [#allocation2], 24
    %v36 = vld [vmem:[%s35] sm:$0xff]
    %v37 = vsub.f32 %v34, %v36
    %v38 = vand.u32 2147483647, %v37
    %vm39 = vcmp.lt.f32.partialorder %v38, 0.11111111
    %v40 = vmul.f32 %v38, 4.5
    %v41 = vmul.f32 %v40, %v38
    %v42 = vsub.f32 %v38, 0.055555556
    %v43 = vsel %vm39, %v41, %v42
    %s44 = scalar_lea.vmem [#allocation2], 16
    %v45 = vld [vmem:[%s44] sm:$0xff]
    %s46 = scalar_lea.vmem [#allocation2], 32
    %v47 = vld [vmem:[%s46] sm:$0xff]
    %v48 = vsub.f32 %v45, %v47
    %v49 = vand.u32 2147483647, %v48
    %vm50 = vcmp.lt.f32.partialorder %v49, 0.11111111
    %v51 = vmul.f32 %v49, 4.5
    %v52 = vmul.f32 %v51, %v49
    %v53 = vsub.f32 %v49, 0.055555556
    %v54 = vsel %vm50, %v52, %v53
    %v55 = vadd.f32 %v43, %v54
    %v56 = vsel %vm32, %v55, 0.0
    %v57 = vsel %vm32, 1.0, 0.0
    %v58 = vadd.f32 %v56, 0.0
    %59 = vst [vmem:[%s1] sm:$0xff] %v58
    %v60 = vadd.f32 %v57, 0.0
    %s61 = scalar_lea.vmem %s1, 8
    %62 = vst [vmem:[%s61] sm:$0xff] %v60
    // Predicated region
    $region6: #{rpn_regr_loss.2} parent=1 // pred_check
      _
    $region7: #{rpn_regr_loss.2} parent=1 // pred_check_branch
      %64 = sbr.rel (0) target = $region9
    $region8: #{rpn_regr_loss.2} parent=1 // pred_region
      _
    $region9: #{rpn_regr_loss.2} parent=1 // pred_fallthru
      _
    // Predicated region
    $region10: #{rpn_regr_loss.2} parent=1 // pred_check
      _
    $region11: #{rpn_regr_loss.2} parent=1 // pred_check_branch
      %66 = sbr.rel (0) target = $region13
    $region12: #{rpn_regr_loss.2} parent=1 // pred_region
      _
    $region13: #{rpn_regr_loss.2} parent=1 // pred_fallthru
      _

</llo_original>
